<compile_context>
chip_gen: v6e
topology: v6e:2x2x1
jax: 0.10.0
libtpu: 0.0.40
codegen_flags: <defaults>
</compile_context>

<pallas_src>
import jax
import jax.numpy as jnp
from jax import lax
from jax.experimental import pallas as pl
from jax.experimental.pallas import tpu as pltpu


def _round_up(x, m):
    return (x + m - 1) // m * m


def _qfunc_kernel(obs_ref, act_ref,
                  w1o_ref, w1a_ref, b1_ref,
                  w2_ref, b2_ref,
                  w3_ref, b3_ref,
                  o_ref):
    # Natural layout: obs [TB, D_obs], act [TB, D_act]; batch ends up on lanes
    # of every matmul result so the [1, TB] output is lane-dense.
    obs = obs_ref[...]
    act = act_ref[...]
    if obs.dtype != jnp.bfloat16:           # accept bf16 inputs directly (no cast)
        obs = obs.astype(jnp.bfloat16)
    if act.dtype != jnp.bfloat16:
        act = act.astype(jnp.bfloat16)

    # Contract the last dim of both operands: W[h, d] . X[tb, d] -> [h, tb].
    contract_last = (((1,), (1,)), ((), ()))

    # Layer 1: split matmul over the concatenated input
    # (1/act_limit already folded into w1a at prep time).
    h = (lax.dot_general(w1o_ref[...], obs, contract_last,
                         preferred_element_type=jnp.float32)
         + lax.dot_general(w1a_ref[...], act, contract_last,
                           preferred_element_type=jnp.float32)
         + b1_ref[...])
    h = jnp.maximum(h, 0.0).astype(jnp.bfloat16)   # ReLU in f32, bf16 for next MXU op

    # Layer 2: [h2, h1] @ [h1, tb] -> [h2, tb]
    h = jnp.dot(w2_ref[...], h, preferred_element_type=jnp.float32) + b2_ref[...]
    h = jnp.maximum(h, 0.0).astype(jnp.bfloat16)

    # Layer 3 (Identity output activation): [1, h2] @ [h2, tb] -> [1, tb]
    q = jnp.dot(w3_ref[...], h, preferred_element_type=jnp.float32) + b3_ref[...]
    o_ref[...] = q.astype(o_ref.dtype)


def _cap_tile_for_vmem(tb, d_obs, d_act, h1, h2, in_itemsize,
                       budget_bytes=24 << 20):
    """Keep per-tile VMEM (double-buffered input blocks + activations + out row)
    comfortably inside the default scoped limit on every generation
    (32 MiB scoped / 64 MiB physical on v7x; 128 MiB physical on v5e/v6e)."""
    def per_tile(t):
        inputs = 2 * (d_obs + d_act) * t * in_itemsize   # double-buffered input blocks
        acts = (h1 + h2) * t * (4 + 2)                   # f32 + bf16 activation copies
        out = 2 * t * 4                                  # double-buffered [1, t] f32 out
        return inputs + acts + out
    while tb > 128 and per_tile(tb) > budget_bytes:
        tb //= 2
    return max(tb, 128)


def _pick_batch_tiling(B, tile_b, d_obs, d_act, h1, h2, in_itemsize):
    """Returns (tb, steps): tb is a multiple of 128; steps is 1 whenever the
    whole (padded) batch fits one tile, otherwise an even grid length so a
    v7x megacore splits the tiles evenly across its two TensorCores."""
    bp128 = _round_up(B, 128)
    cap = max(128, _round_up(min(int(tile_b), bp128), 128))
    cap = _cap_tile_for_vmem(cap, d_obs, d_act, h1, h2, in_itemsize)
    if bp128 <= cap:
        return bp128, 1                                  # single grid step
    steps = (bp128 + cap - 1) // cap
    if steps % 2:
        steps += 1                                       # even grid for v7x balance
    tb = max(128, _round_up((bp128 + steps - 1) // steps, 128))
    return tb, steps


def mlp_qfunction_forward(obs, act, params, *, tile_b=4096):
    """obs [B, obs_dim+goal_dim], act [B, act_dim] -> q [B, 1].
    Inputs may be f32 or bf16 (bf16 halves input HBM traffic)."""
    w1o, w1a, b1, w2, b2, w3, b3 = params
    B, d_obs = obs.shape
    d_act = act.shape[1]
    h1 = w1o.shape[0]
    h2 = w2.shape[0]

    tb, steps = _pick_batch_tiling(B, tile_b, d_obs, d_act, h1, h2,
                                   obs.dtype.itemsize)
    Bp = tb * steps
    if Bp != B:                       # pad batch rows to a tile multiple
        obs = jnp.pad(obs, ((0, Bp - B), (0, 0)))
        act = jnp.pad(act, ((0, Bp - B), (0, 0)))

    in_specs = [
        pl.BlockSpec((tb, d_obs), lambda i: (i, 0)),   # obs tile (pipelined over batch)
        pl.BlockSpec((tb, d_act), lambda i: (i, 0)),   # act tile (pipelined over batch)
        pl.BlockSpec((h1, d_obs), lambda i: (0, 0)),   # weights/biases: VMEM-resident
        pl.BlockSpec((h1, d_act), lambda i: (0, 0)),
        pl.BlockSpec((h1, 1),     lambda i: (0, 0)),
        pl.BlockSpec((h2, h1),    lambda i: (0, 0)),
        pl.BlockSpec((h2, 1),     lambda i: (0, 0)),
        pl.BlockSpec((1, h2),     lambda i: (0, 0)),
        pl.BlockSpec((1, 1),      lambda i: (0, 0)),
    ]
    out_spec = pl.BlockSpec((1, tb), lambda i: (0, i))   # lane-dense [1, TB] output block

    flops = 2 * int(Bp) * ((d_obs + d_act) * h1 + h1 * h2 + h2)
    weight_bytes = sum(int(p.size) * p.dtype.itemsize for p in params)
    bytes_accessed = (int(Bp) * ((d_obs + d_act) * obs.dtype.itemsize + 4)
                      + weight_bytes)

    q_row = pl.pallas_call(
        _qfunc_kernel,
        out_shape=jax.ShapeDtypeStruct((1, Bp), jnp.float32),
        grid_spec=pltpu.PrefetchScalarGridSpec(
            num_scalar_prefetch=0,
            grid=(steps,),
            in_specs=in_specs,
            out_specs=out_spec,
        ),
        compiler_params=pltpu.CompilerParams(
            dimension_semantics=("parallel",)),          # v7x: shard batch tiles over 2 TCs
        cost_estimate=pl.CostEstimate(flops=flops, transcendentals=0,
                                      bytes_accessed=bytes_accessed),
    )(obs, act, w1o, w1a, b1, w2, b2, w3, b3)

    # [1, Bp] row -> [B, 1] column: slice + reshape only (no transpose kernel).
    return q_row[0, :B].reshape(B, 1)


def init_raw_params(key, in_dim, hidden_sizes):
    """PyTorch-style Linear init: uniform(+-1/sqrt(fan_in)); W stored [in, out], b [out]."""
    sizes = [in_dim] + list(hidden_sizes) + [1]
    keys = jax.random.split(key, 2 * (len(sizes) - 1))
    layers = []
    for j in range(len(sizes) - 1):
        bound = 1.0 / float(sizes[j]) ** 0.5
        w = jax.random.uniform(keys[2 * j], (sizes[j], sizes[j + 1]),
                               jnp.float32, -bound, bound)
        b = jax.random.uniform(keys[2 * j + 1], (sizes[j + 1],),
                               jnp.float32, -bound, bound)
        layers.append((w, b))
    return layers


def prepare_kernel_params(raw_layers, obs_plus_goal_dim, act_limit,
                          mxu_dtype=jnp.bfloat16):
    """One-time host-side prep: split W1, fold 1/act_limit into its act half,
    transpose all weights to [out, in], cast matmul weights to the MXU dtype,
    keep biases in f32 as [H, 1] columns (lane-broadcast in kernel).
    Note: for very large act_limit the bf16 quantization of the pre-scaled
    act weights adds a little extra error on top of bf16 MXU operands."""
    (w1, b1), (w2, b2), (w3, b3) = raw_layers
    w1o = w1[:obs_plus_goal_dim, :]
    w1a = w1[obs_plus_goal_dim:, :] * (1.0 / act_limit)
    return (
        jnp.asarray(w1o.T, mxu_dtype),
        jnp.asarray(w1a.T, mxu_dtype),
        b1.reshape(-1, 1).astype(jnp.float32),
        jnp.asarray(w2.T, mxu_dtype),
        b2.reshape(-1, 1).astype(jnp.float32),
        jnp.asarray(w3.T, mxu_dtype),
        b3.reshape(-1, 1).astype(jnp.float32),
    )


def reference_forward(obs, act, raw_layers, act_limit):
    """Pure-JAX f32 reference matching the PyTorch module exactly."""
    (w1, b1), (w2, b2), (w3, b3) = raw_layers
    x = jnp.concatenate([obs, act / act_limit], axis=1)
    h = jnp.maximum(x @ w1 + b1, 0.0)
    h = jnp.maximum(h @ w2 + b2, 0.0)
    return h @ w3 + b3


if __name__ == "__main__":
    # Small shapes consistent with the module.  batch=256 exercises both the
    # single-step grid (default big tile) and the multi-step even grid
    # (tile_b=128 -> 2 tiles, one per v7x TensorCore).
    batch = 256
    obs_dim, goal_dim, act_dim = 10, 6, 8
    hidden_sizes = (32, 32)
    act_limit = 2.0

    key = jax.random.PRNGKey(0)
    k_obs, k_act, k_par = jax.random.split(key, 3)
    obs = jax.random.normal(k_obs, (batch, obs_dim + goal_dim), jnp.float32)
    act = jax.random.normal(k_act, (batch, act_dim), jnp.float32)

    raw = init_raw_params(k_par, obs_dim + goal_dim + act_dim, hidden_sizes)
    params = prepare_kernel_params(raw, obs_dim + goal_dim, act_limit)
    q_ref = reference_forward(obs, act, raw, act_limit)

    # Default: whole batch in one grid step.
    q1 = jax.block_until_ready(mlp_qfunction_forward(obs, act, params))
    # Forced small tile: 2-step even grid (pipelined path / v7x balance).
    q2 = jax.block_until_ready(mlp_qfunction_forward(obs, act, params, tile_b=128))

    assert q1.shape == (batch, 1), q1.shape
    assert q2.shape == (batch, 1), q2.shape
    # bf16 MXU operands (f32 accumulation) vs pure-f32 reference -> relaxed tolerance.
    assert jnp.allclose(q1, q_ref, atol=2e-2, rtol=2e-2), \
        float(jnp.max(jnp.abs(q1 - q_ref)))
    assert jnp.allclose(q2, q_ref, atol=2e-2, rtol=2e-2), \
        float(jnp.max(jnp.abs(q2 - q_ref)))
    print("KERNEL_OK")
</pallas_src>

<mosaic_0001>
module attributes {stable_mosaic.version = 11 : i64} {
  func.func @_qfunc_kernel(%arg0: i32, %arg1: memref<256x16xf32, #tpu.memory_space<vmem>>, %arg2: memref<256x8xf32, #tpu.memory_space<vmem>>, %arg3: memref<32x16xbf16, #tpu.memory_space<vmem>>, %arg4: memref<32x8xbf16, #tpu.memory_space<vmem>>, %arg5: memref<32x1xf32, #tpu.memory_space<vmem>>, %arg6: memref<32x32xbf16, #tpu.memory_space<vmem>>, %arg7: memref<32x1xf32, #tpu.memory_space<vmem>>, %arg8: memref<1x32xbf16, #tpu.memory_space<vmem>>, %arg9: memref<1x1xf32, #tpu.memory_space<vmem>>, %arg10: memref<1x256xf32, #tpu.memory_space<vmem>>) attributes {dimension_semantics = [#tpu.dimension_semantics<parallel>], iteration_bounds = array<i64: 1>, scalar_prefetch = 0 : i64, scratch_operands = 0 : i64, tpu.core_type = #tpu.core_type<tc>, window_params = [{transform_indices = @transform_0, window_bounds = array<i64: 256, 16>}, {transform_indices = @transform_1, window_bounds = array<i64: 256, 8>}, {pipeline_mode = #tpu.pipeline_mode<synchronous>, transform_indices = @transform_2, window_bounds = array<i64: 32, 16>}, {pipeline_mode = #tpu.pipeline_mode<synchronous>, transform_indices = @transform_3, window_bounds = array<i64: 32, 8>}, {pipeline_mode = #tpu.pipeline_mode<synchronous>, transform_indices = @transform_4, window_bounds = array<i64: 32, 1>}, {pipeline_mode = #tpu.pipeline_mode<synchronous>, transform_indices = @transform_5, window_bounds = array<i64: 32, 32>}, {pipeline_mode = #tpu.pipeline_mode<synchronous>, transform_indices = @transform_6, window_bounds = array<i64: 32, 1>}, {pipeline_mode = #tpu.pipeline_mode<synchronous>, transform_indices = @transform_7, window_bounds = array<i64: 1, 32>}, {pipeline_mode = #tpu.pipeline_mode<synchronous>, transform_indices = @transform_8, window_bounds = array<i64: 1, 1>}, {transform_indices = @transform_9, window_bounds = array<i64: 1, 256>}]} {
    %c0 = arith.constant 0 : index
    %c0_0 = arith.constant 0 : index
    %0 = vector.load %arg1[%c0, %c0_0] : memref<256x16xf32, #tpu.memory_space<vmem>>, vector<256x16xf32>
    %c0_1 = arith.constant 0 : index
    %c0_2 = arith.constant 0 : index
    %1 = vector.load %arg2[%c0_1, %c0_2] : memref<256x8xf32, #tpu.memory_space<vmem>>, vector<256x8xf32>
    %2 = arith.truncf %0 : vector<256x16xf32> to vector<256x16xbf16>
    %3 = arith.truncf %1 : vector<256x8xf32> to vector<256x8xbf16>
    %c0_3 = arith.constant 0 : index
    %c0_4 = arith.constant 0 : index
    %4 = vector.load %arg3[%c0_3, %c0_4] : memref<32x16xbf16, #tpu.memory_space<vmem>>, vector<32x16xbf16>
    %cst = arith.constant dense<0.000000e+00> : vector<32x256xf32>
    %5 = tpu.matmul %4, %2, %cst {dimension_numbers = #tpu.dot_dimension_numbers<[1], [1], [0], [0], [0, 0, 1, 0], [], []>} : vector<32x16xbf16>, vector<256x16xbf16>, vector<32x256xf32> -> vector<32x256xf32>
    %c0_5 = arith.constant 0 : index
    %c0_6 = arith.constant 0 : index
    %6 = vector.load %arg4[%c0_5, %c0_6] : memref<32x8xbf16, #tpu.memory_space<vmem>>, vector<32x8xbf16>
    %cst_7 = arith.constant dense<0.000000e+00> : vector<32x256xf32>
    %7 = tpu.matmul %6, %3, %cst_7 {dimension_numbers = #tpu.dot_dimension_numbers<[1], [1], [0], [0], [0, 0, 1, 0], [], []>} : vector<32x8xbf16>, vector<256x8xbf16>, vector<32x256xf32> -> vector<32x256xf32>
    %8 = arith.addf %5, %7 : vector<32x256xf32>
    %c0_8 = arith.constant 0 : index
    %c0_9 = arith.constant 0 : index
    %9 = vector.load %arg5[%c0_8, %c0_9] : memref<32x1xf32, #tpu.memory_space<vmem>>, vector<32x1xf32>
    %10 = vector.broadcast %9 : vector<32x1xf32> to vector<32x256xf32>
    %11 = arith.addf %8, %10 : vector<32x256xf32>
    %cst_10 = arith.constant 0.000000e+00 : f32
    %12 = vector.broadcast %cst_10 : f32 to vector<32x256xf32>
    %13 = arith.maximumf %11, %12 : vector<32x256xf32>
    %14 = arith.truncf %13 : vector<32x256xf32> to vector<32x256xbf16>
    %c0_11 = arith.constant 0 : index
    %c0_12 = arith.constant 0 : index
    %15 = vector.load %arg6[%c0_11, %c0_12] : memref<32x32xbf16, #tpu.memory_space<vmem>>, vector<32x32xbf16>
    %cst_13 = arith.constant dense<0.000000e+00> : vector<32x256xf32>
    %16 = tpu.matmul %15, %14, %cst_13 {dimension_numbers = #tpu.dot_dimension_numbers<[1], [0], [0], [1], [0, 0, 1, 1], [], []>} : vector<32x32xbf16>, vector<32x256xbf16>, vector<32x256xf32> -> vector<32x256xf32>
    %c0_14 = arith.constant 0 : index
    %c0_15 = arith.constant 0 : index
    %17 = vector.load %arg7[%c0_14, %c0_15] : memref<32x1xf32, #tpu.memory_space<vmem>>, vector<32x1xf32>
    %18 = vector.broadcast %17 : vector<32x1xf32> to vector<32x256xf32>
    %19 = arith.addf %16, %18 : vector<32x256xf32>
    %cst_16 = arith.constant 0.000000e+00 : f32
    %20 = vector.broadcast %cst_16 : f32 to vector<32x256xf32>
    %21 = arith.maximumf %19, %20 : vector<32x256xf32>
    %22 = arith.truncf %21 : vector<32x256xf32> to vector<32x256xbf16>
    %c0_17 = arith.constant 0 : index
    %c0_18 = arith.constant 0 : index
    %23 = vector.load %arg8[%c0_17, %c0_18] : memref<1x32xbf16, #tpu.memory_space<vmem>>, vector<1x32xbf16>
    %cst_19 = arith.constant dense<0.000000e+00> : vector<1x256xf32>
    %24 = tpu.matmul %23, %22, %cst_19 {dimension_numbers = #tpu.dot_dimension_numbers<[1], [0], [0], [1], [0, 0, 1, 1], [], []>} : vector<1x32xbf16>, vector<32x256xbf16>, vector<1x256xf32> -> vector<1x256xf32>
    %c0_20 = arith.constant 0 : index
    %c0_21 = arith.constant 0 : index
    %25 = vector.load %arg9[%c0_20, %c0_21] : memref<1x1xf32, #tpu.memory_space<vmem>>, vector<1x1xf32>
    %26 = vector.broadcast %25 : vector<1x1xf32> to vector<1x256xf32>
    %27 = arith.addf %24, %26 : vector<1x256xf32>
    %c0_22 = arith.constant 0 : index
    %c0_23 = arith.constant 0 : index
    %28 = vector.load %arg10[%c0_22, %c0_23] : memref<1x256xf32, #tpu.memory_space<vmem>>, vector<1x256xf32>
    tpu.vector_store %arg10[%c0_22, %c0_23], %27 {strides = array<i32>} : memref<1x256xf32, #tpu.memory_space<vmem>>, vector<1x256xf32>,
    return
  }
  func.func @transform_0(%arg0: i32) -> (i32, i32) {
    %c0_i32 = arith.constant 0 : i32
    %c0_i32_0 = arith.constant 0 : i32
    return %arg0, %c0_i32 : i32, i32
  }
  func.func @transform_1(%arg0: i32) -> (i32, i32) {
    %c0_i32 = arith.constant 0 : i32
    %c0_i32_0 = arith.constant 0 : i32
    return %arg0, %c0_i32 : i32, i32
  }
  func.func @transform_2(%arg0: i32) -> (i32, i32) {
    %c0_i32 = arith.constant 0 : i32
    %c0_i32_0 = arith.constant 0 : i32
    %c0_i32_1 = arith.constant 0 : i32
    return %c0_i32, %c0_i32_0 : i32, i32
  }
  func.func @transform_3(%arg0: i32) -> (i32, i32) {
    %c0_i32 = arith.constant 0 : i32
    %c0_i32_0 = arith.constant 0 : i32
    %c0_i32_1 = arith.constant 0 : i32
    return %c0_i32, %c0_i32_0 : i32, i32
  }
  func.func @transform_4(%arg0: i32) -> (i32, i32) {
    %c0_i32 = arith.constant 0 : i32
    %c0_i32_0 = arith.constant 0 : i32
    %c0_i32_1 = arith.constant 0 : i32
    return %c0_i32, %c0_i32_0 : i32, i32
  }
  func.func @transform_5(%arg0: i32) -> (i32, i32) {
    %c0_i32 = arith.constant 0 : i32
    %c0_i32_0 = arith.constant 0 : i32
    %c0_i32_1 = arith.constant 0 : i32
    return %c0_i32, %c0_i32_0 : i32, i32
  }
  func.func @transform_6(%arg0: i32) -> (i32, i32) {
    %c0_i32 = arith.constant 0 : i32
    %c0_i32_0 = arith.constant 0 : i32
    %c0_i32_1 = arith.constant 0 : i32
    return %c0_i32, %c0_i32_0 : i32, i32
  }
  func.func @transform_7(%arg0: i32) -> (i32, i32) {
    %c0_i32 = arith.constant 0 : i32
    %c0_i32_0 = arith.constant 0 : i32
    %c0_i32_1 = arith.constant 0 : i32
    return %c0_i32, %c0_i32_0 : i32, i32
  }
  func.func @transform_8(%arg0: i32) -> (i32, i32) {
    %c0_i32 = arith.constant 0 : i32
    %c0_i32_0 = arith.constant 0 : i32
    %c0_i32_1 = arith.constant 0 : i32
    return %c0_i32, %c0_i32_0 : i32, i32
  }
  func.func @transform_9(%arg0: i32) -> (i32, i32) {
    %c0_i32 = arith.constant 0 : i32
    %c0_i32_0 = arith.constant 0 : i32
    return %c0_i32, %arg0 : i32, i32
  }
}

</mosaic_0001>

<llo_original>
// kernel: tpu_custom_call.1
$region0: #{tpu_custom_call.1}
  #allocation0 [shape = 'u32[]', space=smem, size = 0x4, offset = 0x4, fixed_abs, tag = 'smem constant byte address 0x4 - core index']
  #allocation1 [shape = 'u32[144,128]{1,0:T(1,128)}', space=vmem, size = 0x12000, scoped, tag = 'internal scratch']
  #allocation2 [shape = 'f32[1,1]{1,0:T(1,128)S(1)}', space=vmem, size = 0x200, scoped, tag = 'scoped memory for tpu_custom_call.1']
  %s0 = inlined_call_operand.vmem [shape: f32[256,16], index: 0, kind: input, shape index: {}]
  %s1 = inlined_call_operand.vmem [shape: f32[256,8], index: 1, kind: input, shape index: {}]
  %s2 = inlined_call_operand.vmem [shape: bf16[32,16], index: 2, kind: input, shape index: {}]
  %s3 = inlined_call_operand.vmem [shape: bf16[32,8], index: 3, kind: input, shape index: {}]
  %s4 = inlined_call_operand.vmem [shape: f32[32,1], index: 4, kind: input, shape index: {}]
  %s5 = inlined_call_operand.vmem [shape: bf16[32,32], index: 5, kind: input, shape index: {}]
  %s6 = inlined_call_operand.vmem [shape: f32[32,1], index: 6, kind: input, shape index: {}]
  %s7 = inlined_call_operand.vmem [shape: bf16[1,32], index: 7, kind: input, shape index: {}]
  %s8 = inlined_call_operand.<no memory space> [shape: f32[1,1], index: 8, kind: input, shape index: {}]
  %s9 = inlined_call_operand.hbm [shape: f32[1,256], index: 9, kind: output, shape index: {}]
  %s10 = sld [smem:[#allocation0]]
  $region46: #{tpu_custom_call.1} parent=0
    _
  %s12 = ssub.s32 1, %s10
  %s13 = scalar_select 0, %s12, %s10
  %v14 = vstv %s8
  %15 = vst [vmem:[#allocation2] sm:$0x1] %v14
  $region1: #{tpu_custom_call.1} parent=0
    #allocation3 [shape = 'u8[1024]{0}', space=vmem, size = 0x400, scoped, tag = 'output window, operand 0, single buffered']
    #allocation4 [shape = 's32[1]{0}', space=sflag, size = 0x4, scoped, tag = 'scoped memory for tpu_custom_call.1']
    %16 = vsyncpa [#allocation4], 0
    // Predicated region
    $region2: #{tpu_custom_call.1} parent=1 // pred_check
      _
    $region3: #{tpu_custom_call.1} parent=1 // pred_check_branch
      %18 = sbr.rel (0) target = $region5
    $region4: #{tpu_custom_call.1} parent=1 // pred_region
      _
    $region5: #{tpu_custom_call.1} parent=1 // pred_fallthru
      _
    // Predicated region
    $region6: #{tpu_custom_call.1} parent=1 // pred_check
      _
    $region7: #{tpu_custom_call.1} parent=1 // pred_check_branch
      %20 = sbr.rel (0) target = $region9
    $region8: #{tpu_custom_call.1} parent=1 // pred_region
      _
    $region9: #{tpu_custom_call.1} parent=1 // pred_fallthru
      _
    // Predicated region
    $region10: #{tpu_custom_call.1} parent=1 // pred_check
      _
    $region11: #{tpu_custom_call.1} parent=1 // pred_check_branch
      %22 = sbr.rel (0) target = $region13
    $region12: #{tpu_custom_call.1} parent=1 // pred_region
      _
    $region13: #{tpu_custom_call.1} parent=1 // pred_fallthru
      _
    // Predicated region
    $region14: #{tpu_custom_call.1} parent=1 // pred_check
      _
    $region15: #{tpu_custom_call.1} parent=1 // pred_check_branch
      %24 = sbr.rel (0) target = $region17
    $region16: #{tpu_custom_call.1} parent=1 // pred_region
      _
    $region17: #{tpu_custom_call.1} parent=1 // pred_fallthru
      _
    // Predicated region
    $region18: #{tpu_custom_call.1} parent=1 // pred_check
      _
    $region19: #{tpu_custom_call.1} parent=1 // pred_check_branch
      %26 = sbr.rel (0) target = $region21
    $region20: #{tpu_custom_call.1} parent=1 // pred_region
      _
    $region21: #{tpu_custom_call.1} parent=1 // pred_fallthru
      _
    // Predicated region
    $region22: #{tpu_custom_call.1} parent=1 // pred_check
      _
    $region23: #{tpu_custom_call.1} parent=1 // pred_check_branch
      %28 = sbr.rel (0) target = $region25
    $region24: #{tpu_custom_call.1} parent=1 // pred_region
      _
    $region25: #{tpu_custom_call.1} parent=1 // pred_fallthru
      _
    // Predicated region
    $region26: #{tpu_custom_call.1} parent=1 // pred_check
      _
    $region27: #{tpu_custom_call.1} parent=1 // pred_check_branch
      %30 = sbr.rel (0) target = $region29
    $region28: #{tpu_custom_call.1} parent=1 // pred_region
      _
    $region29: #{tpu_custom_call.1} parent=1 // pred_fallthru
      _
    // Predicated region
    $region30: #{tpu_custom_call.1} parent=1 // pred_check
      _
    $region31: #{tpu_custom_call.1} parent=1 // pred_check_branch
      %32 = sbr.rel (0) target = $region33
    $region32: #{tpu_custom_call.1} parent=1 // pred_region
      _
    $region33: #{tpu_custom_call.1} parent=1 // pred_fallthru
      _
    // Predicated region
    $region34: #{tpu_custom_call.1} parent=1 // pred_check
      _
    $region35: #{tpu_custom_call.1} parent=1 // pred_check_branch
      %34 = sbr.rel (0) target = $region37
    $region36: #{tpu_custom_call.1} parent=1 // pred_region
      _
    $region37: #{tpu_custom_call.1} parent=1 // pred_fallthru
      _
    %v36 = vld [vmem:[%s0] sm:$0xff]
    %v37 = vld [vmem:[%s0 + $0x8] sm:$0xff]
    %v38 = vld [vmem:[%s0 + $0x10] sm:$0xff]
    %v39 = vld [vmem:[%s0 + $0x18] sm:$0xff]
    %v40 = vld [vmem:[%s0 + $0x20] sm:$0xff]
    %v41 = vld [vmem:[%s0 + $0x28] sm:$0xff]
    %v42 = vld [vmem:[%s0 + $0x30] sm:$0xff]
    %v43 = vld [vmem:[%s0 + $0x38] sm:$0xff]
    %v44 = vld [vmem:[%s0 + $0x40] sm:$0xff]
    %v45 = vld [vmem:[%s0 + $0x48] sm:$0xff]
    %v46 = vld [vmem:[%s0 + $0x50] sm:$0xff]
    %v47 = vld [vmem:[%s0 + $0x58] sm:$0xff]
    %v48 = vld [vmem:[%s0 + $0x60] sm:$0xff]
    %v49 = vld [vmem:[%s0 + $0x68] sm:$0xff]
    %v50 = vld [vmem:[%s0 + $0x70] sm:$0xff]
    %v51 = vld [vmem:[%s0 + $0x78] sm:$0xff]
    %v52 = vld [vmem:[%s0 + $0x80] sm:$0xff]
    %v53 = vld [vmem:[%s0 + $0x88] sm:$0xff]
    %v54 = vld [vmem:[%s0 + $0x90] sm:$0xff]
    %v55 = vld [vmem:[%s0 + $0x98] sm:$0xff]
    %v56 = vld [vmem:[%s0 + $0xa0] sm:$0xff]
    %v57 = vld [vmem:[%s0 + $0xa8] sm:$0xff]
    %v58 = vld [vmem:[%s0 + $0xb0] sm:$0xff]
    %v59 = vld [vmem:[%s0 + $0xb8] sm:$0xff]
    %v60 = vld [vmem:[%s0 + $0xc0] sm:$0xff]
    %v61 = vld [vmem:[%s0 + $0xc8] sm:$0xff]
    %v62 = vld [vmem:[%s0 + $0xd0] sm:$0xff]
    %v63 = vld [vmem:[%s0 + $0xd8] sm:$0xff]
    %v64 = vld [vmem:[%s0 + $0xe0] sm:$0xff]
    %v65 = vld [vmem:[%s0 + $0xe8] sm:$0xff]
    %v66 = vld [vmem:[%s0 + $0xf0] sm:$0xff]
    %v67 = vld [vmem:[%s0 + $0xf8] sm:$0xff]
    %v68 = vld [vmem:[%s1] sm:$0xff]
    %v69 = vld [vmem:[%s1 + $0x8] sm:$0xff]
    %v70 = vld [vmem:[%s1 + $0x10] sm:$0xff]
    %v71 = vld [vmem:[%s1 + $0x18] sm:$0xff]
    %v72 = vld [vmem:[%s1 + $0x20] sm:$0xff]
    %v73 = vld [vmem:[%s1 + $0x28] sm:$0xff]
    %v74 = vld [vmem:[%s1 + $0x30] sm:$0xff]
    %v75 = vld [vmem:[%s1 + $0x38] sm:$0xff]
    %v76 = vld [vmem:[%s1 + $0x40] sm:$0xff]
    %v77 = vld [vmem:[%s1 + $0x48] sm:$0xff]
    %v78 = vld [vmem:[%s1 + $0x50] sm:$0xff]
    %v79 = vld [vmem:[%s1 + $0x58] sm:$0xff]
    %v80 = vld [vmem:[%s1 + $0x60] sm:$0xff]
    %v81 = vld [vmem:[%s1 + $0x68] sm:$0xff]
    %v82 = vld [vmem:[%s1 + $0x70] sm:$0xff]
    %v83 = vld [vmem:[%s1 + $0x78] sm:$0xff]
    %v84 = vld [vmem:[%s1 + $0x80] sm:$0xff]
    %v85 = vld [vmem:[%s1 + $0x88] sm:$0xff]
    %v86 = vld [vmem:[%s1 + $0x90] sm:$0xff]
    %v87 = vld [vmem:[%s1 + $0x98] sm:$0xff]
    %v88 = vld [vmem:[%s1 + $0xa0] sm:$0xff]
    %v89 = vld [vmem:[%s1 + $0xa8] sm:$0xff]
    %v90 = vld [vmem:[%s1 + $0xb0] sm:$0xff]
    %v91 = vld [vmem:[%s1 + $0xb8] sm:$0xff]
    %v92 = vld [vmem:[%s1 + $0xc0] sm:$0xff]
    %v93 = vld [vmem:[%s1 + $0xc8] sm:$0xff]
    %v94 = vld [vmem:[%s1 + $0xd0] sm:$0xff]
    %v95 = vld [vmem:[%s1 + $0xd8] sm:$0xff]
    %v96 = vld [vmem:[%s1 + $0xe0] sm:$0xff]
    %v97 = vld [vmem:[%s1 + $0xe8] sm:$0xff]
    %v98 = vld [vmem:[%s1 + $0xf0] sm:$0xff]
    %v99 = vld [vmem:[%s1 + $0xf8] sm:$0xff]
    %v100 = vpack.c.bf16 %v37, %v36
    %v101 = vpack.c.bf16 %v39, %v38
    %v102 = vpack.c.bf16 %v41, %v40
    %v103 = vpack.c.bf16 %v43, %v42
    %v104 = vpack.c.bf16 %v45, %v44
    %v105 = vpack.c.bf16 %v47, %v46
    %v106 = vpack.c.bf16 %v49, %v48
    %v107 = vpack.c.bf16 %v51, %v50
    %v108 = vpack.c.bf16 %v53, %v52
    %v109 = vpack.c.bf16 %v55, %v54
    %v110 = vpack.c.bf16 %v57, %v56
    %v111 = vpack.c.bf16 %v59, %v58
    %v112 = vpack.c.bf16 %v61, %v60
    %v113 = vpack.c.bf16 %v63, %v62
    %v114 = vpack.c.bf16 %v65, %v64
    %v115 = vpack.c.bf16 %v67, %v66
    %v116 = vpack.c.bf16 %v69, %v68
    %v117 = vpack.c.bf16 %v71, %v70
    %v118 = vpack.c.bf16 %v73, %v72
    %v119 = vpack.c.bf16 %v75, %v74
    %v120 = vpack.c.bf16 %v77, %v76
    %v121 = vpack.c.bf16 %v79, %v78
    %v122 = vpack.c.bf16 %v81, %v80
    %v123 = vpack.c.bf16 %v83, %v82
    %v124 = vpack.c.bf16 %v85, %v84
    %v125 = vpack.c.bf16 %v87, %v86
    %v126 = vpack.c.bf16 %v89, %v88
    %v127 = vpack.c.bf16 %v91, %v90
    %v128 = vpack.c.bf16 %v93, %v92
    %v129 = vpack.c.bf16 %v95, %v94
    %v130 = vpack.c.bf16 %v97, %v96
    %v131 = vpack.c.bf16 %v99, %v98
    %v132 = vld [vmem:[%s2] sm:$0xf]
    %v133 = vld [vmem:[%s2 + $0x4] sm:$0xf]
    %v134 = vld [vmem:[%s2 + $0x8] sm:$0xf]
    %v135 = vld [vmem:[%s2 + $0xc] sm:$0xf]
    %v136 = vld [vmem:[%s3] sm:$0xf]
    %v137 = vld [vmem:[%s3 + $0x4] sm:$0xf]
    %v138 = vld [vmem:[%s3 + $0x8] sm:$0xf]
    %v139 = vld [vmem:[%s3 + $0xc] sm:$0xf]
    %v144 = vunpack.c.l.b16 %v136
    %v145 = vunpack.c.l.b16 %v137
    %v146 = vunpack.c.l.b16 %v138
    %v147 = vunpack.c.l.b16 %v139
    %v148 = vpack.c.b16 %v145, %v144
    %v149 = vpack.c.b16 %v147, %v146
    %vm150 = vcmask 64512
    %v152 = vsel %vm150, %v148, 0
    %v155 = vsel %vm150, %v149, 0
    %v158 = vsel %vm150, %v116, 0
    %v161 = vsel %vm150, %v117, 0
    %v164 = vsel %vm150, %v118, 0
    %v167 = vsel %vm150, %v119, 0
    %v170 = vsel %vm150, %v120, 0
    %v173 = vsel %vm150, %v121, 0
    %v176 = vsel %vm150, %v122, 0
    %v179 = vsel %vm150, %v123, 0
    %v182 = vsel %vm150, %v124, 0
    %v185 = vsel %vm150, %v125, 0
    %v188 = vsel %vm150, %v126, 0
    %v191 = vsel %vm150, %v127, 0
    %v194 = vsel %vm150, %v128, 0
    %v197 = vsel %vm150, %v129, 0
    %v200 = vsel %vm150, %v130, 0
    %v203 = vsel %vm150, %v131, 0
    %205 = vmatprep.subr.bf16.mxu0 0
    %206 = vmatpush1.bf16.xpose.msra.mxu0 %v179
    %207 = vmatprep.subr.bf16.mxu0 0
    %208 = vmatpush1.bf16.xpose.msra.mxu0 %v176
    %209 = vmatprep.subr.bf16.mxu0 0
    %210 = vmatpush1.bf16.xpose.msra.mxu0 %v173
    %211 = vmatprep.subr.bf16.mxu0 0
    %212 = vmatpush1.bf16.xpose.msra.mxu0 %v170
    %213 = vmatprep.subr.bf16.mxu0 0
    %214 = vmatpush1.bf16.xpose.msra.mxu0 %v167
    %215 = vmatprep.subr.bf16.mxu0 0
    %216 = vmatpush1.bf16.xpose.msra.mxu0 %v164
    %217 = vmatprep.subr.bf16.mxu0 0
    %218 = vmatpush1.bf16.xpose.msra.mxu0 %v161
    %219 = vmatprep.subr.bf16.mxu0 0
    %220 = vmatpush1.bf16.xpose.msra.mxu0 %v158
    %221 = vmatprep.subr.bf16.mxu0 0
    %222 = vmatpush2.bf16.xpose.msra.mxu0 %v203
    %223 = vmatprep.subr.bf16.mxu0 0
    %224 = vmatpush2.bf16.xpose.msra.mxu0 %v200
    %225 = vmatprep.subr.bf16.mxu0 0
    %226 = vmatpush2.bf16.xpose.msra.mxu0 %v197
    %227 = vmatprep.subr.bf16.mxu0 0
    %228 = vmatpush2.bf16.xpose.msra.mxu0 %v194
    %229 = vmatprep.subr.bf16.mxu0 0
    %230 = vmatpush2.bf16.xpose.msra.mxu0 %v191
    %231 = vmatprep.subr.bf16.mxu0 0
    %232 = vmatpush2.bf16.xpose.msra.mxu0 %v188
    %233 = vmatprep.subr.bf16.mxu0 0
    %234 = vmatpush2.bf16.xpose.msra.mxu0 %v185
    %235 = vmatprep.subr.bf16.mxu0 0
    %236 = vmatpush2.bf16.xpose.msra.mxu0 %v182
    %237 = vmatprep.mubr.bf16.mxu0 0
    %238 = vmatmul.mubr.bf16.gmra.mxu0 %v152
    %v239 = vpop.f32.mrf.mxu0
    %v240 = vadd.f32 0.0, %v239
    %v241 = vpop.f32.mrf.mxu0
    %v242 = vadd.f32 0.0, %v241
    %v243 = vpop.f32.mrf.mxu0
    %v244 = vadd.f32 0.0, %v243
    %v245 = vpop.f32.mrf.mxu0
    %v246 = vadd.f32 0.0, %v245
    %247 = vmatprep.mubr.bf16.mxu0 0
    %248 = vmatmul.mubr.bf16.gmra.mxu0 %v155
    %v249 = vpop.f32.mrf.mxu0
    %v250 = vadd.f32 0.0, %v249
    %v251 = vpop.f32.mrf.mxu0
    %v252 = vadd.f32 0.0, %v251
    %v253 = vpop.f32.mrf.mxu0
    %v254 = vadd.f32 0.0, %v253
    %v255 = vpop.f32.mrf.mxu0
    %v256 = vadd.f32 0.0, %v255
    %257 = vdwg.mxu0
    %v262 = vunpack.c.l.b16 %v132
    %v263 = vunpack.c.l.b16 %v133
    %v264 = vunpack.c.l.b16 %v134
    %v265 = vunpack.c.l.b16 %v135
    %v266 = vpack.c.b16 %v263, %v262
    %v267 = vpack.c.b16 %v265, %v264
    %vm268 = vcmask 130048
    %v270 = vsel %vm268, %v266, 0
    %v273 = vsel %vm268, %v267, 0
    %v276 = vsel %vm268, %v100, 0
    %v279 = vsel %vm268, %v101, 0
    %v282 = vsel %vm268, %v102, 0
    %v285 = vsel %vm268, %v103, 0
    %v288 = vsel %vm268, %v104, 0
    %v291 = vsel %vm268, %v105, 0
    %v294 = vsel %vm268, %v106, 0
    %v297 = vsel %vm268, %v107, 0
    %v300 = vsel %vm268, %v108, 0
    %v303 = vsel %vm268, %v109, 0
    %v306 = vsel %vm268, %v110, 0
    %v309 = vsel %vm268, %v111, 0
    %v312 = vsel %vm268, %v112, 0
    %v315 = vsel %vm268, %v113, 0
    %v318 = vsel %vm268, %v114, 0
    %v321 = vsel %vm268, %v115, 0
    %323 = vmatprep.subr.bf16.mxu0 0
    %324 = vmatpush1.bf16.xpose.msra.mxu0 %v297
    %325 = vmatprep.subr.bf16.mxu0 0
    %326 = vmatpush1.bf16.xpose.msra.mxu0 %v294
    %327 = vmatprep.subr.bf16.mxu0 0
    %328 = vmatpush1.bf16.xpose.msra.mxu0 %v291
    %329 = vmatprep.subr.bf16.mxu0 0
    %330 = vmatpush1.bf16.xpose.msra.mxu0 %v288
    %331 = vmatprep.subr.bf16.mxu0 0
    %332 = vmatpush1.bf16.xpose.msra.mxu0 %v285
    %333 = vmatprep.subr.bf16.mxu0 0
    %334 = vmatpush1.bf16.xpose.msra.mxu0 %v282
    %335 = vmatprep.subr.bf16.mxu0 0
    %336 = vmatpush1.bf16.xpose.msra.mxu0 %v279
    %337 = vmatprep.subr.bf16.mxu0 0
    %338 = vmatpush1.bf16.xpose.msra.mxu0 %v276
    %339 = vmatprep.subr.bf16.mxu0 0
    %340 = vmatpush2.bf16.xpose.msra.mxu0 %v321
    %341 = vmatprep.subr.bf16.mxu0 0
    %342 = vmatpush2.bf16.xpose.msra.mxu0 %v318
    %343 = vmatprep.subr.bf16.mxu0 0
    %344 = vmatpush2.bf16.xpose.msra.mxu0 %v315
    %345 = vmatprep.subr.bf16.mxu0 0
    %346 = vmatpush2.bf16.xpose.msra.mxu0 %v312
    %347 = vmatprep.subr.bf16.mxu0 0
    %348 = vmatpush2.bf16.xpose.msra.mxu0 %v309
    %349 = vmatprep.subr.bf16.mxu0 0
    %350 = vmatpush2.bf16.xpose.msra.mxu0 %v306
    %351 = vmatprep.subr.bf16.mxu0 0
    %352 = vmatpush2.bf16.xpose.msra.mxu0 %v303
    %353 = vmatprep.subr.bf16.mxu0 0
    %354 = vmatpush2.bf16.xpose.msra.mxu0 %v300
    %355 = vmatprep.mubr.bf16.mxu0 0
    %356 = vmatmul.mubr.bf16.gmra.mxu0 %v270
    %v357 = vpop.f32.mrf.mxu0
    %v358 = vadd.f32 %v240, %v357
    %v359 = vpop.f32.mrf.mxu0
    %v360 = vadd.f32 %v242, %v359
    %v361 = vpop.f32.mrf.mxu0
    %v362 = vadd.f32 %v244, %v361
    %v363 = vpop.f32.mrf.mxu0
    %v364 = vadd.f32 %v246, %v363
    %365 = vmatprep.mubr.bf16.mxu0 0
    %366 = vmatmul.mubr.bf16.gmra.mxu0 %v273
    %v367 = vpop.f32.mrf.mxu0
    %v368 = vadd.f32 %v250, %v367
    %v369 = vpop.f32.mrf.mxu0
    %v370 = vadd.f32 %v252, %v369
    %v371 = vpop.f32.mrf.mxu0
    %v372 = vadd.f32 %v254, %v371
    %v373 = vpop.f32.mrf.mxu0
    %v374 = vadd.f32 %v256, %v373
    %375 = vdwg.mxu0
    %v376 = vld [vmem:[%s4] sm:$0xff]
    %v377 = vld [vmem:[%s4 + $0x8] sm:$0xff]
    %v378 = vld [vmem:[%s4 + $0x10] sm:$0xff]
    %v379 = vld [vmem:[%s4 + $0x18] sm:$0xff]
    %381 = vset.pattern.permute.xlu0 0
    %382 = vperm.xlu0 %381, %v376
    %v383 = vpop.permute.xlu0 %382
    %386 = vset.pattern.permute.xlu0 0
    %387 = vperm.xlu0 %386, %v377
    %v388 = vpop.permute.xlu0 %387
    %391 = vset.pattern.permute.xlu0 0
    %392 = vperm.xlu0 %391, %v378
    %v393 = vpop.permute.xlu0 %392
    %396 = vset.pattern.permute.xlu0 0
    %397 = vperm.xlu0 %396, %v379
    %v398 = vpop.permute.xlu0 %397
    %v400 = vadd.f32 %v358, %v383
    %v401 = vadd.f32 %v360, %v383
    %v402 = vadd.f32 %v362, %v388
    %v403 = vadd.f32 %v364, %v388
    %v404 = vadd.f32 %v368, %v393
    %v405 = vadd.f32 %v370, %v393
    %v406 = vadd.f32 %v372, %v398
    %v407 = vadd.f32 %v374, %v398
    %v408 = vmax.f32 %v400, 0.0
    %v409 = vmax.f32 %v401, 0.0
    %v410 = vmax.f32 %v402, 0.0
    %v411 = vmax.f32 %v403, 0.0
    %v412 = vmax.f32 %v404, 0.0
    %v413 = vmax.f32 %v405, 0.0
    %v414 = vmax.f32 %v406, 0.0
    %v415 = vmax.f32 %v407, 0.0
    %v416 = vpack.c.bf16 %v410, %v408
    %v417 = vpack.c.bf16 %v411, %v409
    %v418 = vpack.c.bf16 %v414, %v412
    %v419 = vpack.c.bf16 %v415, %v413
    %v420 = vld [vmem:[%s5] sm:$0xf]
    %v421 = vld [vmem:[%s5 + $0x4] sm:$0xf]
    %v422 = vld [vmem:[%s5 + $0x8] sm:$0xf]
    %v423 = vld [vmem:[%s5 + $0xc] sm:$0xf]
    %v424 = vld [vmem:[%s6] sm:$0xff]
    %v425 = vld [vmem:[%s6 + $0x8] sm:$0xff]
    %v426 = vld [vmem:[%s6 + $0x10] sm:$0xff]
    %v427 = vld [vmem:[%s6 + $0x18] sm:$0xff]
    %429 = vset.pattern.permute.xlu0 0
    %430 = vperm.xlu0 %429, %v424
    %v431 = vpop.permute.xlu0 %430
    %434 = vset.pattern.permute.xlu0 0
    %435 = vperm.xlu0 %434, %v425
    %v436 = vpop.permute.xlu0 %435
    %439 = vset.pattern.permute.xlu0 0
    %440 = vperm.xlu0 %439, %v426
    %v441 = vpop.permute.xlu0 %440
    %444 = vset.pattern.permute.xlu0 0
    %445 = vperm.xlu0 %444, %v427
    %v446 = vpop.permute.xlu0 %445
    %v452 = vunpack.c.l.b16 %v420
    %v453 = vunpack.c.l.b16 %v421
    %v454 = vunpack.c.l.b16 %v422
    %v455 = vunpack.c.l.b16 %v423
    %v456 = vpack.c.b16 %v453, %v452
    %v457 = vpack.c.b16 %v455, %v454
    %vm458 = vcmask 261120
    %v460 = vsel %vm458, %v456, 0
    %v463 = vsel %vm458, %v457, 0
    %465 = vmatprep.subr.bf16.mxu0 0
    %466 = vmatpush1.bf16.msra.mxu0 0
    %467 = vmatprep.subr.bf16.mxu0 0
    %468 = vmatpush1.bf16.msra.mxu0 0
    %469 = vmatprep.subr.bf16.mxu0 0
    %470 = vmatpush1.bf16.msra.mxu0 0
    %471 = vmatprep.subr.bf16.mxu0 0
    %472 = vmatpush1.bf16.msra.mxu0 0
    %473 = vmatprep.subr.bf16.mxu0 0
    %474 = vmatpush1.bf16.msra.mxu0 0
    %475 = vmatprep.subr.bf16.mxu0 0
    %476 = vmatpush1.bf16.msra.mxu0 0
    %477 = vmatprep.subr.bf16.mxu0 %v419
    %478 = vmatpush1.bf16.msra.mxu0 %v418
    %479 = vmatprep.subr.bf16.mxu0 %v417
    %480 = vmatpush1.bf16.msra.mxu0 %v416
    %481 = vmatprep.subr.bf16.mxu0 0
    %482 = vmatpush2.bf16.msra.mxu0 0
    %483 = vmatprep.subr.bf16.mxu0 0
    %484 = vmatpush2.bf16.msra.mxu0 0
    %485 = vmatprep.subr.bf16.mxu0 0
    %486 = vmatpush2.bf16.msra.mxu0 0
    %487 = vmatprep.subr.bf16.mxu0 0
    %488 = vmatpush2.bf16.msra.mxu0 0
    %489 = vmatprep.subr.bf16.mxu0 0
    %490 = vmatpush2.bf16.msra.mxu0 0
    %491 = vmatprep.subr.bf16.mxu0 0
    %492 = vmatpush2.bf16.msra.mxu0 0
    %493 = vmatprep.subr.bf16.mxu0 0
    %494 = vmatpush2.bf16.msra.mxu0 0
    %495 = vmatprep.subr.bf16.mxu0 0
    %496 = vmatpush2.bf16.msra.mxu0 0
    %497 = vmatprep.mubr.bf16.mxu0 0
    %498 = vmatmul.mubr.bf16.gmra.mxu0 %v460
    %v499 = vpop.f32.mrf.mxu0
    %v500 = vadd.f32 %v431, %v499
    %v501 = vpop.f32.mrf.mxu0
    %v502 = vadd.f32 %v431, %v501
    %v503 = vpop.f32.mrf.mxu0
    %v504 = vadd.f32 %v436, %v503
    %v505 = vpop.f32.mrf.mxu0
    %v506 = vadd.f32 %v436, %v505
    %507 = vmatprep.mubr.bf16.mxu0 0
    %508 = vmatmul.mubr.bf16.gmra.mxu0 %v463
    %v509 = vpop.f32.mrf.mxu0
    %v510 = vadd.f32 %v441, %v509
    %v511 = vpop.f32.mrf.mxu0
    %v512 = vadd.f32 %v441, %v511
    %v513 = vpop.f32.mrf.mxu0
    %v514 = vadd.f32 %v446, %v513
    %v515 = vpop.f32.mrf.mxu0
    %v516 = vadd.f32 %v446, %v515
    %517 = vdwg.mxu0
    %v518 = vmax.f32 %v500, 0.0
    %v519 = vmax.f32 %v502, 0.0
    %v520 = vmax.f32 %v504, 0.0
    %v521 = vmax.f32 %v506, 0.0
    %v522 = vmax.f32 %v510, 0.0
    %v523 = vmax.f32 %v512, 0.0
    %v524 = vmax.f32 %v514, 0.0
    %v525 = vmax.f32 %v516, 0.0
    %v526 = vpack.c.bf16 %v520, %v518
    %v527 = vpack.c.bf16 %v521, %v519
    %v528 = vpack.c.bf16 %v524, %v522
    %v529 = vpack.c.bf16 %v525, %v523
    %v530 = vld [vmem:[%s7] sm:$0x1]
    %v531 = vld [vmem:[#allocation2] sm:$0x1]
    %533 = vset.pattern.permute.xlu0 0
    %534 = vperm.xlu0 %533, %v531
    %v535 = vpop.permute.xlu0 %534
    %v537 = vlaneseq
    %v538 = vshrl.u32 %v537, 7
    %v539 = vsub.s32 0, %v538
    %v540 = vrot.slane %v535, %v539
    %v542 = vsel %vm458, %v530, 0
    %544 = vmatprep.subr.bf16.mxu0 0
    %545 = vmatpush1.bf16.msra.mxu0 0
    %546 = vmatprep.subr.bf16.mxu0 0
    %547 = vmatpush1.bf16.msra.mxu0 0
    %548 = vmatprep.subr.bf16.mxu0 0
    %549 = vmatpush1.bf16.msra.mxu0 0
    %550 = vmatprep.subr.bf16.mxu0 0
    %551 = vmatpush1.bf16.msra.mxu0 0
    %552 = vmatprep.subr.bf16.mxu0 0
    %553 = vmatpush1.bf16.msra.mxu0 0
    %554 = vmatprep.subr.bf16.mxu0 0
    %555 = vmatpush1.bf16.msra.mxu0 0
    %556 = vmatprep.subr.bf16.mxu0 %v529
    %557 = vmatpush1.bf16.msra.mxu0 %v528
    %558 = vmatprep.subr.bf16.mxu0 %v527
    %559 = vmatpush1.bf16.msra.mxu0 %v526
    %560 = vmatprep.subr.bf16.mxu0 0
    %561 = vmatpush2.bf16.msra.mxu0 0
    %562 = vmatprep.subr.bf16.mxu0 0
    %563 = vmatpush2.bf16.msra.mxu0 0
    %564 = vmatprep.subr.bf16.mxu0 0
    %565 = vmatpush2.bf16.msra.mxu0 0
    %566 = vmatprep.subr.bf16.mxu0 0
    %567 = vmatpush2.bf16.msra.mxu0 0
    %568 = vmatprep.subr.bf16.mxu0 0
    %569 = vmatpush2.bf16.msra.mxu0 0
    %570 = vmatprep.subr.bf16.mxu0 0
    %571 = vmatpush2.bf16.msra.mxu0 0
    %572 = vmatprep.subr.bf16.mxu0 0
    %573 = vmatpush2.bf16.msra.mxu0 0
    %574 = vmatprep.subr.bf16.mxu0 0
    %575 = vmatpush2.bf16.msra.mxu0 0
    %576 = vmatprep.mubr.bf16.mxu0 0
    %577 = vmatmul.mubr.bf16.gmra.mxu0 %v542
    %v578 = vpop.f32.mrf.mxu0
    %v579 = vadd.f32 %v540, %v578
    %v580 = vpop.f32.mrf.mxu0
    %v581 = vadd.f32 %v540, %v580
    %v582 = vpop.f32.mrf.mxu0
    %v583 = vpop.f32.mrf.mxu0
    %584 = vdwg.mxu0
    %v587 = vcombine.low %v579, %v581
    %v589 = vunpack.c.l.s4 1966171168
    %v590 = vunpack.c.0.s8 %v589
    %v591 = vlaneseq
    %v592 = vshrl.u32 %v591, 7
    %v593 = vsub.s32 %v590, %v592
    %v594 = vrot.slane %v587, %v593
    %v596 = vunpack.c.l.s4 1966171168
    %v597 = vunpack.c.0.s8 %v596
    %v598 = vlaneseq
    %v599 = vshrl.u32 %v598, 7
    %v600 = vsub.s32 %v597, %v599
    %v601 = vrot.slane %v594, %v600
    %v603 = vlaneseq
    %vm604 = vcmp.ge.s32.totalorder %v603, 0
    %vm605 = vcmp.lt.s32.totalorder %v603, 256
    %vm606 = vmand %vm604, %vm605
    %607 = vst.msk [vmem:[#allocation3] sm:$0x3] %vm606, %v601
    // Predicated region
    $region38: #{tpu_custom_call.1} parent=1 // pred_check
      _
    $region39: #{tpu_custom_call.1} parent=1 // pred_check_branch
      %609 = sbr.rel (0) target = $region41
    $region40: #{tpu_custom_call.1} parent=1 // pred_region
      %s611 = ssub.s32 32, 32
      %612 = vsyncadd [#allocation4], %s611
      %s614 = sshll.u32 [#allocation3], 4
      %s615 = int_to_ptr.vmem [resolvable:$true] %s614
      %617 = dma.vmem_to_hbm [thread:$0]  %s615, 32, %s9, [#allocation4]
    $region41: #{tpu_custom_call.1} parent=1 // pred_fallthru
      _
    // Predicated region
    $region42: #{tpu_custom_call.1} parent=1 // pred_check
      _
    $region43: #{tpu_custom_call.1} parent=1 // pred_check_branch
      %619 = sbr.rel (0) target = $region45
    $region44: #{tpu_custom_call.1} parent=1 // pred_region
      %620 = dma.done [#allocation4], 32
    $region45: #{tpu_custom_call.1} parent=1 // pred_fallthru
      _
    %621 = vsyncpa [#allocation4], 1

</llo_original>
